<compile_context>
chip_gen: v5e
topology: v5e:2x2
jax: 0.10.0
libtpu: 0.0.40
codegen_flags: <defaults>
</compile_context>

<pallas_src>
import jax
import jax.numpy as jnp
from jax.experimental import pallas as pl
from jax.experimental.pallas import tpu as pltpu

HIDDEN = 20  # PINN hidden width: 1 -> 20 -> 20 -> 1

# Packed weight-slab column layout: [ W2^T (20 cols) | W1^T | b1 | b2 | w3 | b3 ]
_W2_LO, _W2_HI = 0, HIDDEN          # cols  0:20
_W1_COL = HIDDEN                    # col  20
_B1_COL = HIDDEN + 1                # col  21
_B2_COL = HIDDEN + 2                # col  22
_W3_COL = HIDDEN + 3                # col  23
_B3_COL = HIDDEN + 4                # col  24
_SLAB_COLS = HIDDEN + 5             # 25 columns total


def pinn_mlp_kernel(x_ref, w_ref, o_ref):
    # x_ref: (1, tm)   batch tile on the lane axis
    # w_ref: (20, 25)  packed weight slab (constant block: DMA'd once, resident)
    # o_ref: (1, tm)
    x = x_ref[...]                                   # (1, tm)
    w = w_ref[...]                                   # (20, 25)

    w2 = w[:, _W2_LO:_W2_HI]                         # (20, 20)  W2^T
    w1 = w[:, _W1_COL:_W1_COL + 1]                   # (20, 1)   W1^T column
    b1 = w[:, _B1_COL:_B1_COL + 1]                   # (20, 1)
    b2 = w[:, _B2_COL:_B2_COL + 1]                   # (20, 1)
    w3 = w[:, _W3_COL:_W3_COL + 1]                   # (20, 1)
    b3 = w[0:1, _B3_COL:_B3_COL + 1]                 # (1, 1)

    # Layer 1: contraction dim K=1 == outer product -> VPU broadcast multiply.
    h1 = jnp.tanh(w1 * x + b1)                       # (20, tm)

    # Layer 2: the only real matmul, (20,20) x (20,tm) on the MXU (lanes full).
    h2 = jnp.tanh(
        jnp.dot(w2, h1, preferred_element_type=jnp.float32) + b2
    )                                                # (20, tm)

    # Layer 3: output width 1 -> VPU multiply + XLU sublane reduce; keeps the
    # MXU free and the store lane-dense (unmasked vst except boundary block).
    out = jnp.sum(w3 * h2, axis=0, keepdims=True) + b3   # (1, tm)
    o_ref[...] = out.astype(o_ref.dtype)


def _pack_weights(params):
    """Pack the 6 tiny operands into one (20, 25) f32 slab (done once, trivial)."""
    w2t = params["w2"].T.astype(jnp.float32)                        # (20, 20)
    w1c = params["w1"].T.astype(jnp.float32)                        # (20, 1)
    b1c = params["b1"].T.astype(jnp.float32)                        # (20, 1)
    b2c = params["b2"].T.astype(jnp.float32)                        # (20, 1)
    w3c = params["w3"].astype(jnp.float32)                          # (20, 1)
    b3c = jnp.broadcast_to(params["b3"].reshape(1, 1).astype(jnp.float32),
                           (HIDDEN, 1))                             # (20, 1)
    slab = jnp.concatenate([w2t, w1c, b1c, b2c, w3c, b3c], axis=1)  # (20, 25)
    assert slab.shape == (HIDDEN, _SLAB_COLS)
    return slab


def pinn_forward(x, params, *, max_tile=8192):
    """x: (N, 1) float32, params in the x @ W + b convention. Returns (N, 1)."""
    N = x.shape[0]

    # Tile choice: large enough to amortize the ~0.35us/step pipeline overhead
    # (up to 8192 lanes ~ <2 MiB of VMEM slabs, fine even on v7x's 64 MiB), but
    # keep >= 2 grid blocks so the ("parallel",) axis can shard batch tiles
    # across v7x's two TensorCores.
    half = ((N + 1) // 2 + 127) // 128 * 128        # round_up(cdiv(N, 2), 128)
    tm = max(128, min(int(max_tile), half))
    grid = pl.cdiv(N, tm)   # ragged last block: OOB reads padded, stores masked

    # (N, 1) -> (1, N) is a metadata-only reshape: batch lands on the lane axis.
    x_row = x.astype(jnp.float32).reshape(1, N)
    slab = _pack_weights(params)

    out = pl.pallas_call(
        pinn_mlp_kernel,
        out_shape=jax.ShapeDtypeStruct((1, N), jnp.float32),
        grid_spec=pltpu.PrefetchScalarGridSpec(
            num_scalar_prefetch=0,
            grid=(grid,),
            in_specs=[
                pl.BlockSpec((1, tm), lambda i: (0, i)),        # x tile, lane-dense
                pl.BlockSpec(slab.shape, lambda i: (0, 0)),     # weights, resident
            ],
            out_specs=pl.BlockSpec((1, tm), lambda i: (0, i)),  # lane-dense store
        ),
        compiler_params=pltpu.CompilerParams(
            # parallel batch axis -> v7x shards tiles across its 2 TensorCores
            dimension_semantics=("parallel",),
        ),
        cost_estimate=pl.CostEstimate(
            flops=2 * HIDDEN * (HIDDEN + 2) * N,   # ~880 * N
            transcendentals=2 * HIDDEN * N,        # 40 * N tanh
            bytes_accessed=8 * N + slab.size * 4,  # f32 in + f32 out + weights
        ),
    )(x_row, slab)

    return out.T  # (1, N) -> (N, 1): free reshape of a one-row array


def init_params(key):
    """Deterministic init mimicking nn.Linear shapes: 1->20->20->1.

    Weights are stored as (in_features, out_features) so the reference computes
    x @ W + b (the wrapper transposes for the batch-on-lanes kernel layout).
    """
    k1, k2, k3, k4, k5, k6 = jax.random.split(key, 6)

    def uniform_linear(kw, kb, fan_in, fan_out):
        # PyTorch default init: U(-1/sqrt(fan_in), 1/sqrt(fan_in))
        bound = 1.0 / jnp.sqrt(jnp.float32(fan_in))
        w = jax.random.uniform(kw, (fan_in, fan_out), jnp.float32, -bound, bound)
        b = jax.random.uniform(kb, (1, fan_out), jnp.float32, -bound, bound)
        return w, b

    w1, b1 = uniform_linear(k1, k2, 1, HIDDEN)
    w2, b2 = uniform_linear(k3, k4, HIDDEN, HIDDEN)
    w3, b3 = uniform_linear(k5, k6, HIDDEN, 1)
    return {"w1": w1, "b1": b1, "w2": w2, "b2": b2, "w3": w3, "b3": b3}


def reference_forward(x, p):
    h1 = jnp.tanh(x @ p["w1"] + p["b1"])
    h2 = jnp.tanh(h1 @ p["w2"] + p["b2"])
    return h2 @ p["w3"] + p["b3"]


if __name__ == "__main__":
    key = jax.random.PRNGKey(0)
    kx, kp = jax.random.split(key)

    # Not a multiple of the tile on purpose: exercises the masked boundary block.
    N = 1000
    x = jax.random.uniform(kx, (N, 1), jnp.float32, -1.0, 1.0)
    params = init_params(kp)

    out = jax.block_until_ready(pinn_forward(x, params))  # grid of 2 parallel tiles

    ref = reference_forward(x, params)
    assert out.shape == (N, 1)
    assert jnp.allclose(out, ref, atol=1e-5, rtol=1e-5), "mismatch vs reference"

    print("KERNEL_OK")
</pallas_src>

<mosaic_0001>
module attributes {stable_mosaic.version = 11 : i64} {
  func.func @pinn_mlp_kernel(%arg0: i32, %arg1: memref<1x512xf32, #tpu.memory_space<vmem>>, %arg2: memref<20x25xf32, #tpu.memory_space<vmem>>, %arg3: memref<1x512xf32, #tpu.memory_space<vmem>>) attributes {dimension_semantics = [#tpu.dimension_semantics<parallel>], iteration_bounds = array<i64: 2>, scalar_prefetch = 0 : i64, scratch_operands = 0 : i64, tpu.core_type = #tpu.core_type<tc>, window_params = [{transform_indices = @transform_0, window_bounds = array<i64: 1, 512>}, {pipeline_mode = #tpu.pipeline_mode<synchronous>, transform_indices = @transform_1, window_bounds = array<i64: 20, 25>}, {transform_indices = @transform_2, window_bounds = array<i64: 1, 512>}]} {
    %c0 = arith.constant 0 : index
    %c0_0 = arith.constant 0 : index
    %0 = vector.load %arg1[%c0, %c0_0] : memref<1x512xf32, #tpu.memory_space<vmem>>, vector<1x512xf32>
    %c0_1 = arith.constant 0 : index
    %c0_2 = arith.constant 0 : index
    %1 = vector.load %arg2[%c0_1, %c0_2] : memref<20x25xf32, #tpu.memory_space<vmem>>, vector<20x25xf32>
    %2 = vector.extract_strided_slice %1 {offsets = [0, 0], sizes = [20, 20], strides = [1, 1]} : vector<20x25xf32> to vector<20x20xf32>
    %3 = vector.extract_strided_slice %1 {offsets = [0, 20], sizes = [20, 1], strides = [1, 1]} : vector<20x25xf32> to vector<20x1xf32>
    %4 = vector.extract_strided_slice %1 {offsets = [0, 21], sizes = [20, 1], strides = [1, 1]} : vector<20x25xf32> to vector<20x1xf32>
    %5 = vector.extract_strided_slice %1 {offsets = [0, 22], sizes = [20, 1], strides = [1, 1]} : vector<20x25xf32> to vector<20x1xf32>
    %6 = vector.extract_strided_slice %1 {offsets = [0, 23], sizes = [20, 1], strides = [1, 1]} : vector<20x25xf32> to vector<20x1xf32>
    %7 = vector.extract_strided_slice %1 {offsets = [0, 24], sizes = [1, 1], strides = [1, 1]} : vector<20x25xf32> to vector<1x1xf32>
    %8 = vector.broadcast %3 : vector<20x1xf32> to vector<20x512xf32>
    %9 = vector.broadcast %0 : vector<1x512xf32> to vector<20x512xf32>
    %10 = arith.mulf %8, %9 : vector<20x512xf32>
    %11 = vector.broadcast %4 : vector<20x1xf32> to vector<20x512xf32>
    %12 = arith.addf %10, %11 : vector<20x512xf32>
    %13 = math.tanh %12 : vector<20x512xf32>
    %cst = arith.constant dense<0.000000e+00> : vector<20x512xf32>
    %14 = tpu.matmul %2, %13, %cst {dimension_numbers = #tpu.dot_dimension_numbers<[1], [0], [0], [1], [0, 0, 1, 1], [], []>} : vector<20x20xf32>, vector<20x512xf32>, vector<20x512xf32> -> vector<20x512xf32>
    %15 = vector.broadcast %5 : vector<20x1xf32> to vector<20x512xf32>
    %16 = arith.addf %14, %15 : vector<20x512xf32>
    %17 = math.tanh %16 : vector<20x512xf32>
    %18 = vector.broadcast %6 : vector<20x1xf32> to vector<20x512xf32>
    %19 = arith.mulf %18, %17 : vector<20x512xf32>
    %cst_3 = arith.constant dense<0.000000e+00> : vector<512xf32>
    %20 = vector.multi_reduction <add>, %19, %cst_3 [0] : vector<20x512xf32> to vector<512xf32>
    %21 = vector.shape_cast %20 : vector<512xf32> to vector<1x512xf32>
    %22 = vector.broadcast %7 : vector<1x1xf32> to vector<1x512xf32>
    %23 = arith.addf %21, %22 : vector<1x512xf32>
    %c0_4 = arith.constant 0 : index
    %c0_5 = arith.constant 0 : index
    %24 = vector.load %arg3[%c0_4, %c0_5] : memref<1x512xf32, #tpu.memory_space<vmem>>, vector<1x512xf32>
    tpu.vector_store %arg3[%c0_4, %c0_5], %23 {strides = array<i32>} : memref<1x512xf32, #tpu.memory_space<vmem>>, vector<1x512xf32>,
    return
  }
  func.func @transform_0(%arg0: i32) -> (i32, i32) {
    %c0_i32 = arith.constant 0 : i32
    %c0_i32_0 = arith.constant 0 : i32
    return %c0_i32, %arg0 : i32, i32
  }
  func.func @transform_1(%arg0: i32) -> (i32, i32) {
    %c0_i32 = arith.constant 0 : i32
    %c0_i32_0 = arith.constant 0 : i32
    %c0_i32_1 = arith.constant 0 : i32
    return %c0_i32, %c0_i32_0 : i32, i32
  }
  func.func @transform_2(%arg0: i32) -> (i32, i32) {
    %c0_i32 = arith.constant 0 : i32
    %c0_i32_0 = arith.constant 0 : i32
    return %c0_i32, %arg0 : i32, i32
  }
}

</mosaic_0001>

<llo_original>
// kernel: tpu_custom_call.1
$region0: #{tpu_custom_call.1}
  #allocation0 [shape = 'u32[]', space=smem, size = 0x4, offset = 0x4, fixed_abs, tag = 'smem constant byte address 0x4 - core index']
  #allocation1 [shape = 'u32[72,128]{1,0:T(1,128)}', space=vmem, size = 0x9000, scoped, tag = 'internal scratch']
  %s0 = inlined_call_operand.hbm [shape: f32[1,1000], index: 0, kind: input, shape index: {}]
  %s1 = inlined_call_operand.hbm [shape: f32[20,25], index: 1, kind: input, shape index: {}]
  %s2 = inlined_call_operand.hbm [shape: f32[1,1000], index: 2, kind: output, shape index: {}]
  %s3 = sld [smem:[#allocation0]]
  $region49: #{tpu_custom_call.1} parent=0
    _
  %s5 = ssub.s32 1, %s3
  %s6 = scalar_select 0, %s5, %s3
  $region1: #{tpu_custom_call.1} parent=0
    #allocation2 [shape = 'u8[4096]{0}', space=vmem, size = 0x1000, scoped, tag = 'input window, operand 0']
    #allocation3 [shape = 's32[2]{0}', space=sflag, size = 0x8, scoped, tag = 'scoped memory for tpu_custom_call.1']
    #allocation4 [shape = 's32[2]{0}', space=sflag, size = 0x8, scoped, tag = 'scoped memory for tpu_custom_call.1']
    #allocation5 [shape = 'u8[12288]{0}', space=vmem, size = 0x3000, scoped, tag = 'input window, operand 1, single buffered']
    #allocation6 [shape = 's32[1]{0}', space=sflag, size = 0x4, scoped, tag = 'scoped memory for tpu_custom_call.1']
    #allocation7 [shape = 'u8[4096]{0}', space=vmem, size = 0x1000, scoped, tag = 'output window, operand 0']
    %7 = vsyncpa [#allocation3], 0
    %s8 = scalar_lea.sflag [#allocation3], 1
    %9 = vsyncpa %s8, 0
    %10 = vsyncpa [#allocation6], 0
    %11 = vsyncpa [#allocation4], 0
    %s12 = scalar_lea.sflag [#allocation4], 1
    %13 = vsyncpa %s12, 0
    loop: start=0, step=1, limit=4
    $region2: #{tpu_custom_call.1} parent=1 // loop_pre_header
      _
    $region3: #{tpu_custom_call.1} parent=1 // loop_header
      %s15 = sphi 0, %s19
      %p16 = scmp.ge.s32.totalorder %s15, 4
      %s25 = sphi 0, %s27
      %s28 = sphi 0, %s25
      %s29 = sphi 0, %s28
      %s45 = sphi 0, %s29
      %s49 = sphi 0, %s49
      %s51 = sphi 0, %s49
      %s52 = sphi 0, %s51
      %s66 = sphi 0, %s52
      %s72 = sphi 0, %s74
      %s75 = sphi 0, %s72
      %s76 = sphi 0, %s75
      %s92 = sphi 0, %s76
    $region4: #{tpu_custom_call.1} parent=1 // loop_header_branch
      %18 = sbr.rel (%p16) target = $region8
    $region5: #{tpu_custom_call.1} parent=1 // loop_body
      %s20 = ssub.s32 %s15, 1
      %s21 = ssub.s32 %s15, 2
      %s22 = sadd.s32 %s15, 1
      %s23 = ssub.s32 %s15, %s22
      %p24 = scmp.eq.s32.totalorder %s23, 0
      %s26 = sadd.s32 %s25, 1
      %s27 = scalar_select %p24, %s25, %s26
      %p30 = pneg %p24
      %p31 = scmp.eq.s32.totalorder %s15, 1
      %p32 = por %p30, %p31
      %p33 = scmp.ne.s32.totalorder %s25, %s28
      %p34 = scmp.eq.s32.totalorder %s15, 0
      %p35 = por %p33, %p34
      %p36 = scmp.ne.s32.totalorder %s25, %s28
      %p37 = scmp.eq.s32.totalorder %s20, 1
      %p38 = por %p36, %p37
      %p39 = scmp.ne.s32.totalorder %s28, %s29
      %p40 = scmp.eq.s32.totalorder %s20, 0
      %p41 = por %p39, %p40
      %p42 = scmp.ne.s32.totalorder %s28, %s29
      %p43 = scmp.eq.s32.totalorder %s21, 1
      %p44 = por %p42, %p43
      %p46 = scmp.ne.s32.totalorder %s29, %s45
      %p47 = scmp.eq.s32.totalorder %s21, 0
      %p48 = por %p46, %p47
      %s50 = sadd.s32 %s49, 1
      %p53 = scmp.eq.s32.totalorder %s15, 1
      %p54 = scmp.ne.s32.totalorder %s49, %s51
      %p55 = scmp.eq.s32.totalorder %s15, 0
      %p56 = por %p54, %p55
      %p57 = scmp.ne.s32.totalorder %s49, %s51
      %p58 = scmp.eq.s32.totalorder %s20, 1
      %p59 = por %p57, %p58
      %p60 = scmp.ne.s32.totalorder %s51, %s52
      %p61 = scmp.eq.s32.totalorder %s20, 0
      %p62 = por %p60, %p61
      %p63 = scmp.ne.s32.totalorder %s51, %s52
      %p64 = scmp.eq.s32.totalorder %s21, 1
      %p65 = por %p63, %p64
      %p67 = scmp.ne.s32.totalorder %s52, %s66
      %p68 = scmp.eq.s32.totalorder %s21, 0
      %p69 = por %p67, %p68
      %s70 = ssub.s32 %s15, %s22
      %p71 = scmp.eq.s32.totalorder %s70, 0
      %s73 = sadd.s32 %s72, 1
      %s74 = scalar_select %p71, %s72, %s73
      %p77 = pneg %p71
      %p78 = scmp.eq.s32.totalorder %s15, 1
      %p79 = por %p77, %p78
      %p80 = scmp.ne.s32.totalorder %s72, %s75
      %p81 = scmp.eq.s32.totalorder %s15, 0
      %p82 = por %p80, %p81
      %p83 = scmp.ne.s32.totalorder %s72, %s75
      %p84 = scmp.eq.s32.totalorder %s20, 1
      %p85 = por %p83, %p84
      %p86 = scmp.ne.s32.totalorder %s75, %s76
      %p87 = scmp.eq.s32.totalorder %s20, 0
      %p88 = por %p86, %p87
      %p89 = scmp.ne.s32.totalorder %s75, %s76
      %p90 = scmp.eq.s32.totalorder %s21, 1
      %p91 = por %p89, %p90
      %p93 = scmp.ne.s32.totalorder %s76, %s92
      %p94 = scmp.eq.s32.totalorder %s21, 0
      %p95 = por %p93, %p94
      %p96 = scmp.le.s32.totalorder 1, %s15
      %p97 = scmp.lt.s32.totalorder %s15, 3
      %p98 = pnand %p96, %p97
      %p99 = pneg %p98
      // Predicated region
      $region9: #{tpu_custom_call.1} parent=5 // pred_check
        _
      $region10: #{tpu_custom_call.1} parent=5 // pred_check_branch
        %101 = sbr.rel (%p98) target = $region12
      $region11: #{tpu_custom_call.1} parent=5 // pred_region
        %s102 = ssub.s32 %s15, 1
        // Predicated region
        $region13: #{tpu_custom_call.1} parent=11 // pred_check
          %p103 = pneg %p62
        $region14: #{tpu_custom_call.1} parent=11 // pred_check_branch
          %105 = sbr.rel (%p103) target = $region16
        $region15: #{tpu_custom_call.1} parent=11 // pred_region
          %107 = vsyncadd [#allocation6], 0
          %s108 = sshll.u32 %s1, 4
          %s109 = int_to_ptr.hbm [resolvable:$true] %s108
          %s110 = sshll.u32 [#allocation5], 4
          %s111 = int_to_ptr.vmem [resolvable:$true] %s110
          %116 = dma.hbm_to_vmem [thread:$0]  %s109, 384, %s111, [#allocation6], 128, 128, 8
        $region16: #{tpu_custom_call.1} parent=11 // pred_fallthru
          _
      $region12: #{tpu_custom_call.1} parent=5 // pred_fallthru
        _
      %p117 = scmp.lt.s32.totalorder %s15, 2
      // Predicated region
      $region17: #{tpu_custom_call.1} parent=5 // pred_check
        %p118 = pneg %p117
      $region18: #{tpu_custom_call.1} parent=5 // pred_check_branch
        %120 = sbr.rel (%p118) target = $region20
      $region19: #{tpu_custom_call.1} parent=5 // pred_region
        // Predicated region
        $region21: #{tpu_custom_call.1} parent=19 // pred_check
          %p121 = pneg %p35
        $region22: #{tpu_custom_call.1} parent=19 // pred_check_branch
          %123 = sbr.rel (%p121) target = $region24
        $region23: #{tpu_custom_call.1} parent=19 // pred_region
          %s124 = sand.u32 %s25, 1
          %s125 = scalar_lea.sflag [#allocation3], %s124
          %s126 = sand.u32 %s25, 1
          %s127 = smul.addr %s126, 4
          %s128 = scalar_lea.vmem [#allocation2], %s127
          %s129 = smul.u32 4, %s15
          %131 = vsyncadd %s125, 0
          %s132 = scalar_lea.hbm %s0, %s129
          %s134 = sshll.u32 %s132, 4
          %s135 = int_to_ptr.hbm [resolvable:$true] %s134
          %s136 = sshll.u32 %s128, 4
          %s137 = int_to_ptr.vmem [resolvable:$true] %s136
          %139 = dma.hbm_to_vmem [thread:$0]  %s135, 64, %s137, %s125
        $region24: #{tpu_custom_call.1} parent=19 // pred_fallthru
          _
      $region20: #{tpu_custom_call.1} parent=5 // pred_fallthru
        _
      %p140 = scmp.le.s32.totalorder 1, %s15
      %p141 = scmp.lt.s32.totalorder %s15, 3
      %p142 = pnand %p140, %p141
      %p143 = pneg %p142
      // Predicated region
      $region25: #{tpu_custom_call.1} parent=5 // pred_check
        _
      $region26: #{tpu_custom_call.1} parent=5 // pred_check_branch
        %145 = sbr.rel (%p142) target = $region28
      $region27: #{tpu_custom_call.1} parent=5 // pred_region
        %s146 = ssub.s32 %s15, 1
        %s147 = sand.u32 %s28, 1
        %s148 = scalar_lea.sflag [#allocation3], %s147
        %s149 = sand.u32 %s28, 1
        %s150 = smul.addr %s149, 4
        %s151 = scalar_lea.vmem [#allocation2], %s150
        // Predicated region
        $region29: #{tpu_custom_call.1} parent=27 // pred_check
          %p152 = pneg %p41
        $region30: #{tpu_custom_call.1} parent=27 // pred_check_branch
          %154 = sbr.rel (%p152) target = $region32
        $region31: #{tpu_custom_call.1} parent=27 // pred_region
          %156 = dma.done %s148, 64
        $region32: #{tpu_custom_call.1} parent=27 // pred_fallthru
          _
        // Predicated region
        $region33: #{tpu_custom_call.1} parent=27 // pred_check
          %p157 = pneg %p62
        $region34: #{tpu_custom_call.1} parent=27 // pred_check_branch
          %159 = sbr.rel (%p157) target = $region36
        $region35: #{tpu_custom_call.1} parent=27 // pred_region
          %161 = dma.done [#allocation6], 384
        $region36: #{tpu_custom_call.1} parent=27 // pred_fallthru
          _
        %s162 = sand.u32 %s28, 1
        %s163 = scalar_lea.sflag [#allocation3], %s162
        %s164 = sand.u32 %s28, 1
        %s165 = smul.addr %s164, 4
        %s166 = scalar_lea.vmem [#allocation2], %s165
        %p167 = pneg %p41
        %p168 = pneg %p38
        %p169 = pneg %p62
        %p170 = pneg %p59
        %p171 = pneg %p88
        %p172 = pneg %p85
        %s173 = sand.u32 %s75, 1
        %s174 = scalar_lea.sflag [#allocation4], %s173
        %s175 = sand.u32 %s75, 1
        %s176 = smul.addr %s175, 4
        %s177 = scalar_lea.vmem [#allocation7], %s176
        %s178 = smul.u32 4, %s20
        %s179 = smul.u32 4, %s20
        %v180 = vld [vmem:[%s151] sm:$0xf]
        %v181 = vld [vmem:[#allocation5] sm:$0xff]
        %v182 = vld [vmem:[#allocation5 + $0x8] sm:$0xff]
        %v183 = vld [vmem:[#allocation5 + $0x10] sm:$0xf]
        %185 = vset.pattern.permute.xlu0 20
        %186 = vperm.xlu0 %185, %v181
        %v187 = vpop.permute.xlu0 %186
        %190 = vset.pattern.permute.xlu0 20
        %191 = vperm.xlu0 %190, %v182
        %v192 = vpop.permute.xlu0 %191
        %195 = vset.pattern.permute.xlu0 20
        %196 = vperm.xlu0 %195, %v183
        %v197 = vpop.permute.xlu0 %196
        %v200 = vperm.slane %v180, 0
        %v201 = vperm.slane %v180, 1
        %v202 = vperm.slane %v180, 2
        %v203 = vperm.slane %v180, 3
        %v208 = vmul.f32 %v187, %v200
        %v209 = vmul.f32 %v187, %v201
        %v210 = vmul.f32 %v187, %v202
        %v211 = vmul.f32 %v187, %v203
        %v212 = vmul.f32 %v192, %v200
        %v213 = vmul.f32 %v192, %v201
        %v214 = vmul.f32 %v192, %v202
        %v215 = vmul.f32 %v192, %v203
        %v216 = vmul.f32 %v197, %v200
        %v217 = vmul.f32 %v197, %v201
        %v218 = vmul.f32 %v197, %v202
        %v219 = vmul.f32 %v197, %v203
        %220 = vset.pattern.permute.xlu0 21
        %221 = vperm.xlu0 %220, %v181
        %v222 = vpop.permute.xlu0 %221
        %224 = vset.pattern.permute.xlu0 21
        %225 = vperm.xlu0 %224, %v182
        %v226 = vpop.permute.xlu0 %225
        %228 = vset.pattern.permute.xlu0 21
        %229 = vperm.xlu0 %228, %v183
        %v230 = vpop.permute.xlu0 %229
        %v232 = vadd.f32 %v208, %v222
        %v233 = vadd.f32 %v209, %v222
        %v234 = vadd.f32 %v210, %v222
        %v235 = vadd.f32 %v211, %v222
        %v236 = vadd.f32 %v212, %v226
        %v237 = vadd.f32 %v213, %v226
        %v238 = vadd.f32 %v214, %v226
        %v239 = vadd.f32 %v215, %v226
        %v240 = vadd.f32 %v216, %v230
        %v241 = vadd.f32 %v217, %v230
        %v242 = vadd.f32 %v218, %v230
        %v243 = vadd.f32 %v219, %v230
        %v244 = vtanh.pop %v232
        %v245 = vtanh.pop %v233
        %v246 = vtanh.pop %v234
        %v247 = vtanh.pop %v235
        %v248 = vtanh.pop %v236
        %v249 = vtanh.pop %v237
        %v250 = vtanh.pop %v238
        %v251 = vtanh.pop %v239
        %v252 = vtanh.pop %v240
        %v253 = vtanh.pop %v241
        %v254 = vtanh.pop %v242
        %v255 = vtanh.pop %v243
        %256 = vset.pattern.permute.xlu0 22
        %257 = vperm.xlu0 %256, %v181
        %v258 = vpop.permute.xlu0 %257
        %260 = vset.pattern.permute.xlu0 22
        %261 = vperm.xlu0 %260, %v182
        %v262 = vpop.permute.xlu0 %261
        %264 = vset.pattern.permute.xlu0 22
        %265 = vperm.xlu0 %264, %v183
        %v266 = vpop.permute.xlu0 %265
        %vm268 = vcmask 162816
        %v269 = vsel %vm268, %v181, 0
        %v271 = vsel %vm268, %v182, 0
        %v273 = vsel %vm268, %v183, 0
        %vm275 = vcmask 1043456
        %v277 = vsel %vm275, %v252, 0
        %v280 = vsel %vm275, %v253, 0
        %v283 = vsel %vm275, %v254, 0
        %v286 = vsel %vm275, %v255, 0
        %288 = vmatpush.msra.mxu0 0.0
        %289 = vmatpush.msra.mxu0 0.0
        %290 = vmatpush.msra.mxu0 0.0
        %291 = vmatpush.msra.mxu0 0.0
        %292 = vmatpush.msra.mxu0 0.0
        %293 = vmatpush.msra.mxu0 0.0
        %294 = vmatpush.msra.mxu0 0.0
        %295 = vmatpush.msra.mxu0 0.0
        %296 = vmatpush.msra.mxu0 0.0
        %297 = vmatpush.msra.mxu0 0.0
        %298 = vmatpush.msra.mxu0 0.0
        %299 = vmatpush.msra.mxu0 0.0
        %300 = vmatpush.msra.mxu0 0.0
        %301 = vmatpush.msra.mxu0 %v277
        %302 = vmatpush.msra.mxu0 %v248
        %303 = vmatpush.msra.mxu0 %v244
        %304 = vmatmul.f32.gmra.mxu0 %v269
        %v305 = vpop.f32.mrf.mxu0
        %v306 = vadd.f32 %v258, %v305
        %307 = vmatmul.f32.gmra.mxu0 %v271
        %v308 = vpop.f32.mrf.mxu0
        %v309 = vadd.f32 %v262, %v308
        %310 = vmatmul.f32.gmra.mxu0 %v273
        %v311 = vpop.f32.mrf.mxu0
        %v312 = vadd.f32 %v266, %v311
        %313 = vdwg.mxu0
        %314 = vmatpush.msra.mxu0 0.0
        %315 = vmatpush.msra.mxu0 0.0
        %316 = vmatpush.msra.mxu0 0.0
        %317 = vmatpush.msra.mxu0 0.0
        %318 = vmatpush.msra.mxu0 0.0
        %319 = vmatpush.msra.mxu0 0.0
        %320 = vmatpush.msra.mxu0 0.0
        %321 = vmatpush.msra.mxu0 0.0
        %322 = vmatpush.msra.mxu0 0.0
        %323 = vmatpush.msra.mxu0 0.0
        %324 = vmatpush.msra.mxu0 0.0
        %325 = vmatpush.msra.mxu0 0.0
        %326 = vmatpush.msra.mxu0 0.0
        %327 = vmatpush.msra.mxu0 %v280
        %328 = vmatpush.msra.mxu0 %v249
        %329 = vmatpush.msra.mxu0 %v245
        %330 = vmatmul.f32.gmra.mxu0 %v269
        %v331 = vpop.f32.mrf.mxu0
        %v332 = vadd.f32 %v258, %v331
        %333 = vmatmul.f32.gmra.mxu0 %v271
        %v334 = vpop.f32.mrf.mxu0
        %v335 = vadd.f32 %v262, %v334
        %336 = vmatmul.f32.gmra.mxu0 %v273
        %v337 = vpop.f32.mrf.mxu0
        %v338 = vadd.f32 %v266, %v337
        %339 = vdwg.mxu0
        %340 = vmatpush.msra.mxu0 0.0
        %341 = vmatpush.msra.mxu0 0.0
        %342 = vmatpush.msra.mxu0 0.0
        %343 = vmatpush.msra.mxu0 0.0
        %344 = vmatpush.msra.mxu0 0.0
        %345 = vmatpush.msra.mxu0 0.0
        %346 = vmatpush.msra.mxu0 0.0
        %347 = vmatpush.msra.mxu0 0.0
        %348 = vmatpush.msra.mxu0 0.0
        %349 = vmatpush.msra.mxu0 0.0
        %350 = vmatpush.msra.mxu0 0.0
        %351 = vmatpush.msra.mxu0 0.0
        %352 = vmatpush.msra.mxu0 0.0
        %353 = vmatpush.msra.mxu0 %v283
        %354 = vmatpush.msra.mxu0 %v250
        %355 = vmatpush.msra.mxu0 %v246
        %356 = vmatmul.f32.gmra.mxu0 %v269
        %v357 = vpop.f32.mrf.mxu0
        %v358 = vadd.f32 %v258, %v357
        %359 = vmatmul.f32.gmra.mxu0 %v271
        %v360 = vpop.f32.mrf.mxu0
        %v361 = vadd.f32 %v262, %v360
        %362 = vmatmul.f32.gmra.mxu0 %v273
        %v363 = vpop.f32.mrf.mxu0
        %v364 = vadd.f32 %v266, %v363
        %365 = vdwg.mxu0
        %366 = vmatpush.msra.mxu0 0.0
        %367 = vmatpush.msra.mxu0 0.0
        %368 = vmatpush.msra.mxu0 0.0
        %369 = vmatpush.msra.mxu0 0.0
        %370 = vmatpush.msra.mxu0 0.0
        %371 = vmatpush.msra.mxu0 0.0
        %372 = vmatpush.msra.mxu0 0.0
        %373 = vmatpush.msra.mxu0 0.0
        %374 = vmatpush.msra.mxu0 0.0
        %375 = vmatpush.msra.mxu0 0.0
        %376 = vmatpush.msra.mxu0 0.0
        %377 = vmatpush.msra.mxu0 0.0
        %378 = vmatpush.msra.mxu0 0.0
        %379 = vmatpush.msra.mxu0 %v286
        %380 = vmatpush.msra.mxu0 %v251
        %381 = vmatpush.msra.mxu0 %v247
        %382 = vmatmul.f32.gmra.mxu0 %v269
        %v383 = vpop.f32.mrf.mxu0
        %v384 = vadd.f32 %v258, %v383
        %385 = vmatmul.f32.gmra.mxu0 %v271
        %v386 = vpop.f32.mrf.mxu0
        %v387 = vadd.f32 %v262, %v386
        %388 = vmatmul.f32.gmra.mxu0 %v273
        %v389 = vpop.f32.mrf.mxu0
        %v390 = vadd.f32 %v266, %v389
        %391 = vdwg.mxu0
        %v392 = vtanh.pop %v306
        %v393 = vtanh.pop %v332
        %v394 = vtanh.pop %v358
        %v395 = vtanh.pop %v384
        %v396 = vtanh.pop %v309
        %v397 = vtanh.pop %v335
        %v398 = vtanh.pop %v361
        %v399 = vtanh.pop %v387
        %v400 = vtanh.pop %v312
        %v401 = vtanh.pop %v338
        %v402 = vtanh.pop %v364
        %v403 = vtanh.pop %v390
        %404 = vset.pattern.permute.xlu0 23
        %405 = vperm.xlu0 %404, %v181
        %v406 = vpop.permute.xlu0 %405
        %408 = vset.pattern.permute.xlu0 23
        %409 = vperm.xlu0 %408, %v182
        %v410 = vpop.permute.xlu0 %409
        %412 = vset.pattern.permute.xlu0 23
        %413 = vperm.xlu0 %412, %v183
        %v414 = vpop.permute.xlu0 %413
        %v416 = vmul.f32 %v406, %v392
        %v417 = vmul.f32 %v406, %v393
        %v418 = vmul.f32 %v406, %v394
        %v419 = vmul.f32 %v406, %v395
        %v420 = vmul.f32 %v410, %v396
        %v421 = vmul.f32 %v410, %v397
        %v422 = vmul.f32 %v410, %v398
        %v423 = vmul.f32 %v410, %v399
        %v424 = vmul.f32 %v414, %v400
        %v425 = vmul.f32 %v414, %v401
        %v426 = vmul.f32 %v414, %v402
        %v427 = vmul.f32 %v414, %v403
        %v428 = vadd.f32 %v416, %v420
        %v429 = vsel %vm275, %v424, 0.0
        %v430 = vadd.f32 %v428, %v429
        %v431 = vrot.slane %v430, 4
        %v432 = vadd.f32 %v430, %v431
        %v433 = vrot.slane %v432, 2
        %v434 = vadd.f32 %v432, %v433
        %v435 = vrot.slane %v434, 1
        %v436 = vadd.f32 %v434, %v435
        %v437 = vadd.f32 %v417, %v421
        %v438 = vsel %vm275, %v425, 0.0
        %v439 = vadd.f32 %v437, %v438
        %v440 = vrot.slane %v439, 4
        %v441 = vadd.f32 %v439, %v440
        %v442 = vrot.slane %v441, 2
        %v443 = vadd.f32 %v441, %v442
        %v444 = vrot.slane %v443, 1
        %v445 = vadd.f32 %v443, %v444
        %v446 = vadd.f32 %v418, %v422
        %v447 = vsel %vm275, %v426, 0.0
        %v448 = vadd.f32 %v446, %v447
        %v449 = vrot.slane %v448, 4
        %v450 = vadd.f32 %v448, %v449
        %v451 = vrot.slane %v450, 2
        %v452 = vadd.f32 %v450, %v451
        %v453 = vrot.slane %v452, 1
        %v454 = vadd.f32 %v452, %v453
        %v455 = vadd.f32 %v419, %v423
        %v456 = vsel %vm275, %v427, 0.0
        %v457 = vadd.f32 %v455, %v456
        %v458 = vrot.slane %v457, 4
        %v459 = vadd.f32 %v457, %v458
        %v460 = vrot.slane %v459, 2
        %v461 = vadd.f32 %v459, %v460
        %v462 = vrot.slane %v461, 1
        %v463 = vadd.f32 %v461, %v462
        %464 = vset.pattern.permute.xlu0 24
        %465 = vperm.xlu0 %464, %v181
        %v466 = vpop.permute.xlu0 %465
        %v468 = vadd.f32 %v436, %v466
        %v469 = vadd.f32 %v445, %v466
        %v470 = vadd.f32 %v454, %v466
        %v471 = vadd.f32 %v463, %v466
        %v476 = vrot.slane %v469, 7
        %v477 = vrot.slane %v470, 6
        %v478 = vrot.slane %v471, 5
        %vm479 = vcmask 1040384
        %v480 = vsel %vm479, %v468, %v476
        %vm481 = vcmask 1042434
        %v482 = vsel %vm481, %v477, %v478
        %vm483 = vcmask 1041408
        %v484 = vsel %vm483, %v480, %v482
        %v486 = vlaneseq
        %vm487 = vcmp.ge.s32.totalorder %v486, 0
        %vm488 = vcmp.lt.s32.totalorder %v486, 512
        %vm489 = vmand %vm487, %vm488
        %490 = vst.msk [vmem:[%s177] sm:$0xf] %vm489, %v484
        %s491 = sand.u32 %s75, 1
        %s492 = scalar_lea.sflag [#allocation4], %s491
        %s493 = sand.u32 %s75, 1
        %s494 = smul.addr %s493, 4
        %s495 = scalar_lea.vmem [#allocation7], %s494
        // Predicated region
        $region37: #{tpu_custom_call.1} parent=27 // pred_check
          %p496 = pneg %p85
        $region38: #{tpu_custom_call.1} parent=27 // pred_check_branch
          %498 = sbr.rel (%p496) target = $region40
        $region39: #{tpu_custom_call.1} parent=27 // pred_region
          %s499 = smul.u32 4, %s20
          %501 = vsyncadd %s492, 0
          %s502 = scalar_lea.hbm %s2, %s499
          %s504 = sshll.u32 %s495, 4
          %s505 = int_to_ptr.vmem [resolvable:$true] %s504
          %s506 = sshll.u32 %s502, 4
          %s507 = int_to_ptr.hbm [resolvable:$true] %s506
          %509 = dma.vmem_to_hbm [thread:$0]  %s505, 64, %s507, %s492
        $region40: #{tpu_custom_call.1} parent=27 // pred_fallthru
          _
      $region28: #{tpu_custom_call.1} parent=5 // pred_fallthru
        _
      %p510 = scmp.le.s32.totalorder 2, %s15
      // Predicated region
      $region41: #{tpu_custom_call.1} parent=5 // pred_check
        %p511 = pneg %p510
      $region42: #{tpu_custom_call.1} parent=5 // pred_check_branch
        %513 = sbr.rel (%p511) target = $region44
      $region43: #{tpu_custom_call.1} parent=5 // pred_region
        %s514 = ssub.s32 %s15, 2
        // Predicated region
        $region45: #{tpu_custom_call.1} parent=43 // pred_check
          %p515 = pneg %p91
        $region46: #{tpu_custom_call.1} parent=43 // pred_check_branch
          %517 = sbr.rel (%p515) target = $region48
        $region47: #{tpu_custom_call.1} parent=43 // pred_region
          %s518 = sand.u32 %s76, 1
          %s519 = scalar_lea.sflag [#allocation4], %s518
          %s520 = sand.u32 %s76, 1
          %s521 = smul.addr %s520, 4
          %s522 = scalar_lea.vmem [#allocation7], %s521
          %524 = dma.done %s519, 64
        $region48: #{tpu_custom_call.1} parent=43 // pred_fallthru
          _
      $region44: #{tpu_custom_call.1} parent=5 // pred_fallthru
        _
    $region6: #{tpu_custom_call.1} parent=1 // loop_footer
      %s19 = sadd.s32 1, %s15
    $region7: #{tpu_custom_call.1} parent=1 // loop_footer_branch
      %14 = sbr.rel target = $region3
    $region8: #{tpu_custom_call.1} parent=1 // loop_exit
      _
    %525 = vsyncpa [#allocation3], 1
    %s526 = scalar_lea.sflag [#allocation3], 1
    %527 = vsyncpa %s526, 1
    %528 = vsyncpa [#allocation6], 1
    %529 = vsyncpa [#allocation4], 1
    %s530 = scalar_lea.sflag [#allocation4], 1
    %531 = vsyncpa %s530, 1

</llo_original>
